<compile_context>
chip_gen: v7x
topology: tpu7x:2x2x1
jax: 0.10.0
libtpu: 0.0.40
codegen_flags: <defaults>
</compile_context>

<pallas_src>
import jax
import jax.numpy as jnp
from jax.experimental import pallas as pl
from jax.experimental.pallas import tpu as pltpu


def _round_up(x, m):
    return ((x + m - 1) // m) * m


def _linear_kernel(x_ref, w_ref, b_ref, o_ref):
    # In-kernel float() cast, MXU matmul with f32 accumulation, bias add.
    x = x_ref[...].astype(jnp.float32)
    acc = jnp.dot(x, w_ref[...], preferred_element_type=jnp.float32)
    o_ref[...] = (acc + b_ref[...]).astype(o_ref.dtype)


def net_encoder_forward(data, weight, bias, input_size, block_rows=16384):
    """Equivalent of Net_encoder.forward.

    data:   any shape whose total size is a multiple of input_size
    weight: [input_size, hidden_size]  (transposed vs. torch.nn.Linear.weight), f32
    bias:   [hidden_size], f32
    block_rows: max logical (unpacked) rows processed per grid step.
    """
    # data.float().view(-1, input_size): reshape is free; float() is in-kernel.
    x = data.reshape(-1, input_size)
    n, k = x.shape
    h = weight.shape[1]

    # --- Lane-dense packing: fold 2 logical rows into one physical row. ------
    pack = 2 if (n % 2 == 0 and n >= 2) else 1
    if pack == 2:
        xp = x.reshape(n // 2, 2 * k)  # free, row-major contiguous
        zero = jnp.zeros_like(weight)
        wp = jnp.block([[weight, zero], [zero, weight]])        # (2k, 2h) block-diag
        bp = jnp.concatenate([bias, bias]).reshape(1, 2 * h)    # (1, 2h)
    else:
        xp = x
        wp = weight
        bp = bias.reshape(1, h)

    n_rows, kp = xp.shape
    hp = wp.shape[1]

    # --- Row tile: multiple of 8, big enough to amortize per-step overhead, --
    # --- capped so large inputs still give >= 8 grid steps (v7x dual-TC). ----
    max_rows = max(8, _round_up(block_rows // pack, 8))
    tm = max(8, min(max_rows, _round_up(pl.cdiv(n_rows, 8), 8)))
    grid = (pl.cdiv(n_rows, tm),)  # partial last block handled by Pallas masking

    cost = pl.CostEstimate(
        flops=2 * n * k * h,
        transcendentals=0,
        bytes_accessed=(n * (k + h) + k * h + h) * 4,
    )

    out = pl.pallas_call(
        _linear_kernel,
        out_shape=jax.ShapeDtypeStruct((n_rows, hp), jnp.float32),
        grid_spec=pltpu.PrefetchScalarGridSpec(
            num_scalar_prefetch=0,
            grid=grid,
            in_specs=[
                pl.BlockSpec((tm, kp), lambda i: (i, 0)),   # x: tiled over rows
                pl.BlockSpec((kp, hp), lambda i: (0, 0)),   # weight: resident
                pl.BlockSpec((1, hp), lambda i: (0, 0)),    # bias: resident
            ],
            out_specs=pl.BlockSpec((tm, hp), lambda i: (i, 0)),
        ),
        compiler_params=pltpu.CompilerParams(
            dimension_semantics=("parallel",),   # shard rows across TCs (v7x)
            vmem_limit_bytes=32 * 1024 * 1024,   # headroom for large tiles on v5e
        ),
        cost_estimate=cost,
    )(xp, wp, bp)

    if pack == 2:
        out = out.reshape(n, h)  # free reshape (contiguous unpack)
    return out


def init_params(key, input_size, hidden_size=64):
    # Deterministic init mimicking nn.Linear's uniform(-1/sqrt(fan_in), 1/sqrt(fan_in)).
    kw, kb = jax.random.split(key)
    bound = 1.0 / jnp.sqrt(jnp.float32(input_size))
    weight = jax.random.uniform(
        kw, (input_size, hidden_size), jnp.float32, minval=-bound, maxval=bound
    )
    bias = jax.random.uniform(
        kb, (hidden_size,), jnp.float32, minval=-bound, maxval=bound
    )
    return weight, bias


if __name__ == "__main__":
    key = jax.random.PRNGKey(0)
    k_data, k_params = jax.random.split(key)

    input_size = 64
    hidden_size = 64

    weight, bias = init_params(k_params, input_size, hidden_size)

    # Small example: flattens to (-1, input_size) = (8, 64); even rows -> packed path.
    data = jax.random.normal(k_data, (2, 4, input_size), dtype=jnp.float32)
    out = jax.block_until_ready(net_encoder_forward(data, weight, bias, input_size))
    ref = data.reshape(-1, input_size).astype(jnp.float32) @ weight + bias
    assert out.shape == (8, hidden_size)
    assert jnp.allclose(out, ref, atol=1e-5, rtol=1e-5)

    # Even, ragged row count (114 rows -> 57 packed rows, partial last block masked).
    data_even = jax.random.normal(k_data, (19, 6, input_size), dtype=jnp.float32)
    out_even = jax.block_until_ready(
        net_encoder_forward(data_even, weight, bias, input_size)
    )
    ref_even = data_even.reshape(-1, input_size) @ weight + bias
    assert out_even.shape == (19 * 6, hidden_size)
    assert jnp.allclose(out_even, ref_even, atol=1e-5, rtol=1e-5)

    # Odd row count (185 rows): unpacked fallback path, partial last block masked.
    data_odd = jax.random.normal(k_data, (37, 5, input_size), dtype=jnp.float32)
    out_odd = jax.block_until_ready(
        net_encoder_forward(data_odd, weight, bias, input_size)
    )
    ref_odd = data_odd.reshape(-1, input_size) @ weight + bias
    assert out_odd.shape == (37 * 5, hidden_size)
    assert jnp.allclose(out_odd, ref_odd, atol=1e-5, rtol=1e-5)

    print("KERNEL_OK")
</pallas_src>

<mosaic_0001>
module attributes {stable_mosaic.version = 11 : i64} {
  func.func @_linear_kernel(%arg0: i32, %arg1: memref<8x128xf32, #tpu.memory_space<vmem>>, %arg2: memref<128x128xf32, #tpu.memory_space<vmem>>, %arg3: memref<1x128xf32, #tpu.memory_space<vmem>>, %arg4: memref<8x128xf32, #tpu.memory_space<vmem>>) attributes {dimension_semantics = [#tpu.dimension_semantics<parallel>], iteration_bounds = array<i64: 1>, scalar_prefetch = 0 : i64, scratch_operands = 0 : i64, tpu.core_type = #tpu.core_type<tc>, window_params = [{transform_indices = @transform_0, window_bounds = array<i64: 8, 128>}, {pipeline_mode = #tpu.pipeline_mode<synchronous>, transform_indices = @transform_1, window_bounds = array<i64: 128, 128>}, {pipeline_mode = #tpu.pipeline_mode<synchronous>, transform_indices = @transform_2, window_bounds = array<i64: 1, 128>}, {transform_indices = @transform_3, window_bounds = array<i64: 8, 128>}]} {
    %c0 = arith.constant 0 : index
    %c0_0 = arith.constant 0 : index
    %0 = vector.load %arg1[%c0, %c0_0] : memref<8x128xf32, #tpu.memory_space<vmem>>, vector<8x128xf32>
    %c0_1 = arith.constant 0 : index
    %c0_2 = arith.constant 0 : index
    %1 = vector.load %arg2[%c0_1, %c0_2] : memref<128x128xf32, #tpu.memory_space<vmem>>, vector<128x128xf32>
    %cst = arith.constant dense<0.000000e+00> : vector<8x128xf32>
    %2 = tpu.matmul %0, %1, %cst {dimension_numbers = #tpu.dot_dimension_numbers<[1], [0], [0], [1], [0, 0, 1, 1], [], []>} : vector<8x128xf32>, vector<128x128xf32>, vector<8x128xf32> -> vector<8x128xf32>
    %c0_3 = arith.constant 0 : index
    %c0_4 = arith.constant 0 : index
    %3 = vector.load %arg3[%c0_3, %c0_4] : memref<1x128xf32, #tpu.memory_space<vmem>>, vector<1x128xf32>
    %4 = vector.broadcast %3 : vector<1x128xf32> to vector<8x128xf32>
    %5 = arith.addf %2, %4 : vector<8x128xf32>
    %c0_5 = arith.constant 0 : index
    %c0_6 = arith.constant 0 : index
    %6 = vector.load %arg4[%c0_5, %c0_6] : memref<8x128xf32, #tpu.memory_space<vmem>>, vector<8x128xf32>
    tpu.vector_store %arg4[%c0_5, %c0_6], %5 {strides = array<i32>} : memref<8x128xf32, #tpu.memory_space<vmem>>, vector<8x128xf32>,
    return
  }
  func.func @transform_0(%arg0: i32) -> (i32, i32) {
    %c0_i32 = arith.constant 0 : i32
    %c0_i32_0 = arith.constant 0 : i32
    return %arg0, %c0_i32 : i32, i32
  }
  func.func @transform_1(%arg0: i32) -> (i32, i32) {
    %c0_i32 = arith.constant 0 : i32
    %c0_i32_0 = arith.constant 0 : i32
    %c0_i32_1 = arith.constant 0 : i32
    return %c0_i32, %c0_i32_0 : i32, i32
  }
  func.func @transform_2(%arg0: i32) -> (i32, i32) {
    %c0_i32 = arith.constant 0 : i32
    %c0_i32_0 = arith.constant 0 : i32
    %c0_i32_1 = arith.constant 0 : i32
    return %c0_i32, %c0_i32_0 : i32, i32
  }
  func.func @transform_3(%arg0: i32) -> (i32, i32) {
    %c0_i32 = arith.constant 0 : i32
    %c0_i32_0 = arith.constant 0 : i32
    return %arg0, %c0_i32 : i32, i32
  }
}

</mosaic_0001>

<llo_original>
// kernel: tpu_custom_call.1
$region0: #{tpu_custom_call.1}
  #allocation0 [shape = 'u32[]', space=smem, size = 0x4, offset = 0x4, fixed_abs, tag = 'smem constant byte address 0x4 - core index']
  #allocation1 [shape = 'u32[144,128]{1,0:T(1,128)}', space=vmem, size = 0x12000, scoped, tag = 'internal scratch']
  %s0 = inlined_call_operand.hbm [shape: f32[4,128], index: 0, kind: input, shape index: {}]
  %s1 = inlined_call_operand.hbm [shape: f32[128,128], index: 1, kind: input, shape index: {}]
  %s2 = inlined_call_operand.vmem [shape: f32[1,128], index: 2, kind: input, shape index: {}]
  %s3 = inlined_call_operand.hbm [shape: f32[4,128], index: 3, kind: output, shape index: {}]
  %s4 = sld [smem:[#allocation0]]
  $region30: #{tpu_custom_call.1} parent=0
    _
  %s6 = ssub.s32 1, %s4
  %s7 = scalar_select 0, %s6, %s4
  $region1: #{tpu_custom_call.1} parent=0
    #allocation2 [shape = 'u8[4096]{0}', space=vmem, size = 0x1000, scoped, tag = 'input window, operand 0, single buffered']
    #allocation3 [shape = 's32[1]{0}', space=sflag, size = 0x4, scoped, tag = 'scoped memory for tpu_custom_call.1']
    #allocation4 [shape = 's32[1]{0}', space=sflag, size = 0x4, scoped, tag = 'scoped memory for tpu_custom_call.1']
    #allocation5 [shape = 'u8[65536]{0}', space=vmem, size = 0x10000, scoped, tag = 'input window, operand 1, single buffered']
    #allocation6 [shape = 's32[1]{0}', space=sflag, size = 0x4, scoped, tag = 'scoped memory for tpu_custom_call.1']
    #allocation7 [shape = 'u8[4096]{0}', space=vmem, size = 0x1000, scoped, tag = 'output window, operand 0, single buffered']
    %8 = vsyncpa [#allocation3], 0
    %9 = vsyncpa [#allocation6], 0
    %10 = vsyncpa [#allocation4], 0
    // Predicated region
    $region2: #{tpu_custom_call.1} parent=1 // pred_check
      _
    $region3: #{tpu_custom_call.1} parent=1 // pred_check_branch
      %12 = sbr.rel (0) target = $region5
    $region4: #{tpu_custom_call.1} parent=1 // pred_region
      %s14 = ssub.s32 128, 64
      %15 = vsyncadd [#allocation3], %s14
      %s16 = sshll.u32 [#allocation2], 4
      %s17 = int_to_ptr.vmem [resolvable:$true] %s16
      %22 = dma.hbm_to_vmem [thread:$0]  %s0, 64, %s17, [#allocation3], 64, 64, 4
    $region5: #{tpu_custom_call.1} parent=1 // pred_fallthru
      _
    // Predicated region
    $region6: #{tpu_custom_call.1} parent=1 // pred_check
      _
    $region7: #{tpu_custom_call.1} parent=1 // pred_check_branch
      %24 = sbr.rel (0) target = $region9
    $region8: #{tpu_custom_call.1} parent=1 // pred_region
      %s26 = ssub.s32 2048, 2048
      %27 = vsyncadd [#allocation6], %s26
      %s28 = sshll.u32 [#allocation5], 4
      %s29 = int_to_ptr.vmem [resolvable:$true] %s28
      %34 = dma.hbm_to_vmem [thread:$0]  %s1, 2048, %s29, [#allocation6], 128, 128, 8
    $region9: #{tpu_custom_call.1} parent=1 // pred_fallthru
      _
    // Predicated region
    $region10: #{tpu_custom_call.1} parent=1 // pred_check
      _
    $region11: #{tpu_custom_call.1} parent=1 // pred_check_branch
      %36 = sbr.rel (0) target = $region13
    $region12: #{tpu_custom_call.1} parent=1 // pred_region
      _
    $region13: #{tpu_custom_call.1} parent=1 // pred_fallthru
      _
    // Predicated region
    $region14: #{tpu_custom_call.1} parent=1 // pred_check
      _
    $region15: #{tpu_custom_call.1} parent=1 // pred_check_branch
      %38 = sbr.rel (0) target = $region17
    $region16: #{tpu_custom_call.1} parent=1 // pred_region
      %39 = dma.done [#allocation3], 128
    $region17: #{tpu_custom_call.1} parent=1 // pred_fallthru
      _
    // Predicated region
    $region18: #{tpu_custom_call.1} parent=1 // pred_check
      _
    $region19: #{tpu_custom_call.1} parent=1 // pred_check_branch
      %41 = sbr.rel (0) target = $region21
    $region20: #{tpu_custom_call.1} parent=1 // pred_region
      %42 = dma.done [#allocation6], 2048
    $region21: #{tpu_custom_call.1} parent=1 // pred_fallthru
      _
    %v43 = vld [vmem:[#allocation2] sm:$0xff]
    %v44 = vld [vmem:[#allocation5] sm:$0xff]
    %v45 = vld [vmem:[#allocation5 + $0x8] sm:$0xff]
    %v46 = vld [vmem:[#allocation5 + $0x10] sm:$0xff]
    %v47 = vld [vmem:[#allocation5 + $0x18] sm:$0xff]
    %v48 = vld [vmem:[#allocation5 + $0x20] sm:$0xff]
    %v49 = vld [vmem:[#allocation5 + $0x28] sm:$0xff]
    %v50 = vld [vmem:[#allocation5 + $0x30] sm:$0xff]
    %v51 = vld [vmem:[#allocation5 + $0x38] sm:$0xff]
    %v52 = vld [vmem:[#allocation5 + $0x40] sm:$0xff]
    %v53 = vld [vmem:[#allocation5 + $0x48] sm:$0xff]
    %v54 = vld [vmem:[#allocation5 + $0x50] sm:$0xff]
    %v55 = vld [vmem:[#allocation5 + $0x58] sm:$0xff]
    %v56 = vld [vmem:[#allocation5 + $0x60] sm:$0xff]
    %v57 = vld [vmem:[#allocation5 + $0x68] sm:$0xff]
    %v58 = vld [vmem:[#allocation5 + $0x70] sm:$0xff]
    %v59 = vld [vmem:[#allocation5 + $0x78] sm:$0xff]
    %v60 = vld [vmem:[%s2] sm:$0x1]
    %v62 = vlaneseq
    %v63 = vshrl.u32 %v62, 7
    %v64 = vsub.s32 0, %v63
    %v65 = vrot.slane %v60, %v64
    %67 = vmatprep.subr.mxu0 0.0
    %68 = vmatpush1.msra.mxu0 %v44
    %69 = vmatprep.subr.mxu0 0.0
    %70 = vmatpush1.msra.mxu0 %v45
    %71 = vmatprep.subr.mxu0 0.0
    %72 = vmatpush1.msra.mxu0 %v46
    %73 = vmatprep.subr.mxu0 0.0
    %74 = vmatpush1.msra.mxu0 %v47
    %75 = vmatprep.subr.mxu0 0.0
    %76 = vmatpush1.msra.mxu0 %v48
    %77 = vmatprep.subr.mxu0 0.0
    %78 = vmatpush1.msra.mxu0 %v49
    %79 = vmatprep.subr.mxu0 0.0
    %80 = vmatpush1.msra.mxu0 %v50
    %81 = vmatprep.subr.mxu0 0.0
    %82 = vmatpush1.msra.mxu0 %v51
    %83 = vmatprep.subr.mxu0 0.0
    %84 = vmatpush1.msra.mxu0 %v52
    %85 = vmatprep.subr.mxu0 0.0
    %86 = vmatpush1.msra.mxu0 %v53
    %87 = vmatprep.subr.mxu0 0.0
    %88 = vmatpush1.msra.mxu0 %v54
    %89 = vmatprep.subr.mxu0 0.0
    %90 = vmatpush1.msra.mxu0 %v55
    %91 = vmatprep.subr.mxu0 0.0
    %92 = vmatpush1.msra.mxu0 %v56
    %93 = vmatprep.subr.mxu0 0.0
    %94 = vmatpush1.msra.mxu0 %v57
    %95 = vmatprep.subr.mxu0 0.0
    %96 = vmatpush1.msra.mxu0 %v58
    %97 = vmatprep.subr.mxu0 0.0
    %98 = vmatpush1.msra.mxu0 %v59
    %99 = vmatprep.subr.mxu0 0.0
    %100 = vmatpush1.msra.mxu0 0.0
    %101 = vmatprep.subr.mxu0 0.0
    %102 = vmatpush1.msra.mxu0 0.0
    %103 = vmatprep.subr.mxu0 0.0
    %104 = vmatpush1.msra.mxu0 0.0
    %105 = vmatprep.subr.mxu0 0.0
    %106 = vmatpush1.msra.mxu0 0.0
    %107 = vmatprep.subr.mxu0 0.0
    %108 = vmatpush1.msra.mxu0 0.0
    %109 = vmatprep.subr.mxu0 0.0
    %110 = vmatpush1.msra.mxu0 0.0
    %111 = vmatprep.subr.mxu0 0.0
    %112 = vmatpush1.msra.mxu0 0.0
    %113 = vmatprep.subr.mxu0 0.0
    %114 = vmatpush1.msra.mxu0 0.0
    %115 = vmatprep.subr.mxu0 0.0
    %116 = vmatpush1.msra.mxu0 0.0
    %117 = vmatprep.subr.mxu0 0.0
    %118 = vmatpush1.msra.mxu0 0.0
    %119 = vmatprep.subr.mxu0 0.0
    %120 = vmatpush1.msra.mxu0 0.0
    %121 = vmatprep.subr.mxu0 0.0
    %122 = vmatpush1.msra.mxu0 0.0
    %123 = vmatprep.subr.mxu0 0.0
    %124 = vmatpush1.msra.mxu0 0.0
    %125 = vmatprep.subr.mxu0 0.0
    %126 = vmatpush1.msra.mxu0 0.0
    %127 = vmatprep.subr.mxu0 0.0
    %128 = vmatpush1.msra.mxu0 0.0
    %129 = vmatprep.subr.mxu0 0.0
    %130 = vmatpush1.msra.mxu0 0.0
    %131 = vmatprep.mubr.f32.mxu0 0.0
    %132 = vmatmul.mubr.f32.gmra.mrb[0].mxu0 %v43
    %v133 = vpop.f32.mrb[0].mxu0
    %v134 = vadd.f32 %v65, %v133
    %v135 = vpop.f32.mrb[0].mxu0
    %136 = vdwg.mxu0
    %137 = vst [vmem:[#allocation7] sm:$0xff] %v134
    // Predicated region
    $region22: #{tpu_custom_call.1} parent=1 // pred_check
      _
    $region23: #{tpu_custom_call.1} parent=1 // pred_check_branch
      %139 = sbr.rel (0) target = $region25
    $region24: #{tpu_custom_call.1} parent=1 // pred_region
      %s141 = ssub.s32 128, 64
      %142 = vsyncadd [#allocation4], %s141
      %s143 = sshll.u32 [#allocation7], 4
      %s144 = int_to_ptr.vmem [resolvable:$true] %s143
      %149 = dma.vmem_to_hbm [thread:$0]  %s144, 64, %s3, [#allocation4], 64, 64, 4
    $region25: #{tpu_custom_call.1} parent=1 // pred_fallthru
      _
    // Predicated region
    $region26: #{tpu_custom_call.1} parent=1 // pred_check
      _
    $region27: #{tpu_custom_call.1} parent=1 // pred_check_branch
      %151 = sbr.rel (0) target = $region29
    $region28: #{tpu_custom_call.1} parent=1 // pred_region
      %152 = dma.done [#allocation4], 128
    $region29: #{tpu_custom_call.1} parent=1 // pred_fallthru
      _
    %153 = vsyncpa [#allocation3], 1
    %154 = vsyncpa [#allocation6], 1
    %155 = vsyncpa [#allocation4], 1

</llo_original>
